<compile_context>
chip_gen: v7x
topology: tpu7x:2x2x1
jax: 0.10.0
libtpu: 0.0.40
codegen_flags: <defaults>
</compile_context>

<pallas_src>
import functools

import jax
import jax.numpy as jnp
from jax import lax
from jax.experimental import pallas as pl
from jax.experimental.pallas import tpu as pltpu


def _round_up(x, m):
    return (x + m - 1) // m * m


# ----------------------------------------------------------------------------
# Chip-adaptive tiling limits (v7x has 64 MiB VMEM/TC; v5e/v6e have 128 MiB).
# ----------------------------------------------------------------------------
def _detect_vmem_bytes():
    try:
        return int(pltpu.get_tpu_info().vmem_capacity_bytes)
    except Exception:
        return 64 * 1024 * 1024          # conservative fallback (v7x-sized)


_VMEM_BYTES = _detect_vmem_bytes()
_TM_MAX = 1024 if _VMEM_BYTES >= (100 << 20) else 512
_MM_VMEM_LIMIT = (64 << 20) if _TM_MAX == 1024 else (40 << 20)
_K_SINGLE_MAX = 8192                     # largest K in this model (disc last conv: 512*4*4)


# ----------------------------------------------------------------------------
# Tiled MXU matmul with fused bias + activation epilogue (the conv hot path).
#   A: (Mp, Kp) bf16   B: (Kp, Np) bf16 (pre-packed at init)   bias: (1, Np) f32
# ----------------------------------------------------------------------------
def _matmul_bias_act_1k_kernel(a_ref, b_ref, bias_ref, o_ref, *, act):
    # Single reduction step: no accumulator scratch, result written exactly once.
    r = jnp.dot(a_ref[...], b_ref[...], preferred_element_type=jnp.float32) + bias_ref[...]
    if act == "relu":
        r = jnp.maximum(r, 0.0)
    elif act == "leaky":
        r = jnp.maximum(r, 0.2 * r)
    o_ref[...] = r.astype(o_ref.dtype)


def _matmul_bias_act_acc_kernel(a_ref, b_ref, bias_ref, o_ref, acc_ref, *, act):
    # Multi-K fallback (not used by any layer of this model).
    @pl.when(pl.program_id(2) == 0)
    def _():
        acc_ref[...] = jnp.zeros_like(acc_ref)

    acc_ref[...] += jnp.dot(a_ref[...], b_ref[...], preferred_element_type=jnp.float32)

    @pl.when(pl.program_id(2) == pl.num_programs(2) - 1)
    def _():
        r = acc_ref[...] + bias_ref[...]
        if act == "relu":
            r = jnp.maximum(r, 0.0)
        elif act == "leaky":
            r = jnp.maximum(r, 0.2 * r)
        o_ref[...] = r.astype(o_ref.dtype)


def _choose_tm(M):
    # Prefer the largest tile <= _TM_MAX that divides M exactly (no wrapper pad / slice).
    for tm in (1024, 512, 256, 128):
        if tm <= _TM_MAX and M % tm == 0:
            return tm
    if M <= _TM_MAX:
        return _round_up(M, 16)          # single (possibly slightly padded) tile
    return min(512, _TM_MAX)             # ragged large M: pad up to a tile multiple


def matmul_bias_act(a, b_p, bias_p, *, act="none", out_dtype=jnp.bfloat16):
    M, K = a.shape
    Kp, Np = b_p.shape
    tm = _choose_tm(M)
    Mp = _round_up(M, tm)
    a_p = a.astype(jnp.bfloat16)
    if (Mp, Kp) != (M, K):
        a_p = jnp.pad(a_p, ((0, Mp - M), (0, Kp - K)))

    if Kp <= _K_SINGLE_MAX:
        # Single K step, tn == Np: B/bias index maps are constant -> weights fetched once.
        return pl.pallas_call(
            functools.partial(_matmul_bias_act_1k_kernel, act=act),
            out_shape=jax.ShapeDtypeStruct((Mp, Np), out_dtype),
            grid_spec=pltpu.PrefetchScalarGridSpec(
                num_scalar_prefetch=0,
                grid=(Mp // tm,),
                in_specs=[
                    pl.BlockSpec((tm, Kp), lambda i: (i, 0)),
                    pl.BlockSpec((Kp, Np), lambda i: (0, 0)),
                    pl.BlockSpec((1, Np), lambda i: (0, 0)),
                ],
                out_specs=pl.BlockSpec((tm, Np), lambda i: (i, 0)),
            ),
            compiler_params=pltpu.CompilerParams(
                dimension_semantics=("parallel",),
                vmem_limit_bytes=_MM_VMEM_LIMIT),
        )(a_p, b_p, bias_p)

    # Fallback: chunked K with an f32 accumulator (pack_conv pads such K to 2048 multiples).
    tn, tk = Np, 2048
    return pl.pallas_call(
        functools.partial(_matmul_bias_act_acc_kernel, act=act),
        out_shape=jax.ShapeDtypeStruct((Mp, Np), out_dtype),
        grid_spec=pltpu.PrefetchScalarGridSpec(
            num_scalar_prefetch=0,
            grid=(Mp // tm, Np // tn, Kp // tk),
            in_specs=[
                pl.BlockSpec((tm, tk), lambda i, j, k: (i, k)),
                pl.BlockSpec((tk, tn), lambda i, j, k: (k, j)),
                pl.BlockSpec((1, tn), lambda i, j, k: (0, j)),
            ],
            out_specs=pl.BlockSpec((tm, tn), lambda i, j, k: (i, j)),
            scratch_shapes=[pltpu.VMEM((tm, tn), jnp.float32)]),
        compiler_params=pltpu.CompilerParams(
            dimension_semantics=("parallel", "parallel", "arbitrary"),
            vmem_limit_bytes=_MM_VMEM_LIMIT),
    )(a_p, b_p, bias_p)


# ----------------------------------------------------------------------------
# Conv2d (NHWC activations) = im2col + fused matmul.  Weights pre-packed at init.
# ----------------------------------------------------------------------------
def pack_conv(w, b, *, stride, pad):
    """w: (OC, IC, kh, kw) f32 -> (Kp, OCp) bf16 matrix + (1, OCp) f32 bias."""
    oc, ic, kh, kw = w.shape
    K = ic * kh * kw
    # K padded only to a 16-multiple (bf16 sublane pair), not 128 -- the first convs
    # (K=27 / K=48) run on the largest spatial maps and dominate A-side HBM traffic.
    Kp = _round_up(K, 16) if K <= _K_SINGLE_MAX else _round_up(K, 2048)
    Np = _round_up(oc, 128)
    wm = jnp.zeros((Kp, Np), jnp.bfloat16)
    wm = wm.at[:K, :oc].set(w.reshape(oc, K).T.astype(jnp.bfloat16))
    bias = jnp.zeros((1, Np), jnp.float32)
    if b is not None:
        bias = bias.at[0, :oc].set(b.astype(jnp.float32))
    return dict(wm=wm, bias=bias, oc=oc, kh=kh, kw=kw, stride=stride, pad=pad)


def conv2d_mm(x, conv, *, act="none", out_dtype=jnp.bfloat16):
    """x: (N, H, W, C) -> (N, Ho, Wo, OC)."""
    n = x.shape[0]
    kh, kw, s, p = conv["kh"], conv["kw"], conv["stride"], conv["pad"]
    patches = lax.conv_general_dilated_patches(
        x.astype(jnp.bfloat16), (kh, kw), (s, s), ((p, p), (p, p)),
        dimension_numbers=("NHWC", "HWIO", "NHWC"))
    _, ho, wo, K = patches.shape                 # feature dim is channel-major (c, i, j)
    m = n * ho * wo
    a = patches.reshape(m, K)
    out = matmul_bias_act(a, conv["wm"], conv["bias"], act=act, out_dtype=out_dtype)
    oc = conv["oc"]
    if out.shape[0] != m or out.shape[1] != oc:  # only when M/OC were padded
        out = out[:m, :oc]
    return out.reshape(n, ho, wo, oc)


def max_pool2_nhwc(x):
    return lax.reduce_window(x, jnp.array(-jnp.inf, x.dtype), lax.max,
                             (1, 2, 2, 1), (1, 2, 2, 1), "VALID")


# ----------------------------------------------------------------------------
# Fused BatchNorm2d (training-mode, biased batch stats) + LeakyReLU(0.2) in Pallas.
# ----------------------------------------------------------------------------
def _bn_stats_kernel(x_ref, s_ref, q_ref):
    @pl.when(pl.program_id(0) == 0)
    def _():
        s_ref[...] = jnp.zeros_like(s_ref)
        q_ref[...] = jnp.zeros_like(q_ref)
    shp = x_ref.shape                              # (1, H, W, C)
    x = x_ref[...].astype(jnp.float32).reshape(shp[1] * shp[2], shp[3])
    s_ref[...] += jnp.sum(x, axis=0, keepdims=True)
    q_ref[...] += jnp.sum(x * x, axis=0, keepdims=True)


def _bn_apply_leaky_kernel(x_ref, scale_ref, shift_ref, o_ref):
    x = x_ref[...].astype(jnp.float32)
    y = x * scale_ref[...] + shift_ref[...]
    o_ref[...] = jnp.maximum(y, 0.2 * y).astype(o_ref.dtype)


def batch_norm_leaky(x, gamma, beta, eps=1e-5):
    n, h, w, c = x.shape
    sums, sqs = pl.pallas_call(
        _bn_stats_kernel,
        out_shape=(jax.ShapeDtypeStruct((1, c), jnp.float32),
                   jax.ShapeDtypeStruct((1, c), jnp.float32)),
        grid_spec=pltpu.PrefetchScalarGridSpec(
            num_scalar_prefetch=0, grid=(n,),
            in_specs=[pl.BlockSpec((1, h, w, c), lambda i: (i, 0, 0, 0))],
            out_specs=(pl.BlockSpec((1, c), lambda i: (0, 0)),
                       pl.BlockSpec((1, c), lambda i: (0, 0)))),
        compiler_params=pltpu.CompilerParams(dimension_semantics=("arbitrary",)),
    )(x)
    cnt = float(n * h * w)
    mean = sums / cnt
    var = sqs / cnt - mean * mean
    scale = gamma.reshape(1, c) * lax.rsqrt(var + eps)
    shift = beta.reshape(1, c) - mean * scale
    return pl.pallas_call(
        _bn_apply_leaky_kernel,
        out_shape=jax.ShapeDtypeStruct((n, h, w, c), jnp.bfloat16),
        grid_spec=pltpu.PrefetchScalarGridSpec(
            num_scalar_prefetch=0, grid=(n,),
            in_specs=[pl.BlockSpec((1, h, w, c), lambda i: (i, 0, 0, 0)),
                      pl.BlockSpec((1, 1, 1, c), lambda i: (0, 0, 0, 0)),
                      pl.BlockSpec((1, 1, 1, c), lambda i: (0, 0, 0, 0))],
            out_specs=pl.BlockSpec((1, h, w, c), lambda i: (i, 0, 0, 0))),
        compiler_params=pltpu.CompilerParams(dimension_semantics=("parallel",)),
    )(x, scale.reshape(1, 1, 1, c), shift.reshape(1, 1, 1, c))


# ----------------------------------------------------------------------------
# Generic tiled Pallas sum-reduction: sum(elem_fn(*arrays)).
# Inputs are flattened, zero-padded to (rows_p, 512) blocks; every elem_fn used below maps
# all-zero inputs to 0, so the padding contributes nothing.  The leading "parallel" grid
# axis splits row-blocks across both v7x TensorCores (per-core partials summed outside).
# ----------------------------------------------------------------------------
_RED_LANES = 512


def _make_reduce_kernel(elem_fn, n_in):
    def kernel(*refs):
        o_ref = refs[n_in]

        @pl.when(pl.program_id(1) == 0)
        def _():
            o_ref[...] = jnp.zeros_like(o_ref)

        vals = [r[...].astype(jnp.float32) for r in refs[:n_in]]
        v = elem_fn(*vals)
        part = jnp.sum(jnp.sum(v, axis=1, keepdims=True), axis=0, keepdims=True)
        o_ref[...] += part[None]

    return kernel


def tiled_sum(elem_fn, *arrays):
    flats = [jnp.ravel(a).astype(jnp.float32) for a in arrays]
    size = flats[0].size
    rows = max(1, pl.cdiv(size, _RED_LANES))
    tr = 512 if rows >= 512 else _round_up(rows, 8)
    nblk = pl.cdiv(rows, tr)
    ncores = 2 if nblk >= 2 else 1
    nblk_p = _round_up(nblk, ncores)
    bpc = nblk_p // ncores
    rows_p = nblk_p * tr
    padded = [jnp.pad(f, (0, rows_p * _RED_LANES - size)).reshape(rows_p, _RED_LANES)
              for f in flats]
    out = pl.pallas_call(
        _make_reduce_kernel(elem_fn, len(arrays)),
        out_shape=jax.ShapeDtypeStruct((ncores, 1, 1), jnp.float32),
        grid_spec=pltpu.PrefetchScalarGridSpec(
            num_scalar_prefetch=0,
            grid=(ncores, bpc),
            in_specs=[pl.BlockSpec((tr, _RED_LANES), lambda c, i: (c * bpc + i, 0))
                      for _ in arrays],
            out_specs=pl.BlockSpec((1, 1, 1), lambda c, i: (c, 0, 0))),
        compiler_params=pltpu.CompilerParams(
            dimension_semantics=("parallel", "arbitrary")),
    )(*padded)
    return jnp.sum(out)


# ----------------------------------------------------------------------------
# LPIPS per-layer distance: unit-normalize over C (f32), squared diff, 1x1 "lin" head,
# spatial mean -- tiled over spatial blocks with resident per-core (1, N, 1) accumulators.
# ----------------------------------------------------------------------------
def _lpips_dist_kernel(f0_ref, f1_ref, w_ref, o_ref):
    @pl.when(pl.program_id(1) == 0)
    def _():
        o_ref[...] = jnp.zeros_like(o_ref)

    f0 = f0_ref[...].astype(jnp.float32)           # (N, thw, C)
    f1 = f1_ref[...].astype(jnp.float32)
    # inverse norms via sqrt + EUP reciprocal; zero-padded rows stay exactly zero
    inv0 = pl.reciprocal(jnp.sqrt(jnp.sum(f0 * f0, axis=2, keepdims=True)) + 1e-10, approx=True)
    inv1 = pl.reciprocal(jnp.sqrt(jnp.sum(f1 * f1, axis=2, keepdims=True)) + 1e-10, approx=True)
    d = f0 * inv0 - f1 * inv1
    lin = jnp.sum(d * d * w_ref[...], axis=2)       # 1x1 "lin" conv (C -> 1): (N, thw)
    o_ref[...] += jnp.sum(lin, axis=1, keepdims=True)[None]


def lpips_layer_dist(f0, f1, lin_w):
    n, h, w, c = f0.shape
    hw = h * w
    thw = 512 if hw >= 512 else _round_up(hw, 8)
    nblk = pl.cdiv(hw, thw)
    ncores = 2 if nblk >= 2 else 1
    nblk_p = _round_up(nblk, ncores)
    bpc = nblk_p // ncores
    hwp = nblk_p * thw
    f0r = f0.reshape(n, hw, c)
    f1r = f1.reshape(n, hw, c)
    if hwp != hw:
        f0r = jnp.pad(f0r, ((0, 0), (0, hwp - hw), (0, 0)))
        f1r = jnp.pad(f1r, ((0, 0), (0, hwp - hw), (0, 0)))
    out = pl.pallas_call(
        _lpips_dist_kernel,
        out_shape=jax.ShapeDtypeStruct((ncores, n, 1), jnp.float32),
        grid_spec=pltpu.PrefetchScalarGridSpec(
            num_scalar_prefetch=0,
            grid=(ncores, bpc),
            in_specs=[pl.BlockSpec((n, thw, c), lambda cc, i: (0, cc * bpc + i, 0)),
                      pl.BlockSpec((n, thw, c), lambda cc, i: (0, cc * bpc + i, 0)),
                      pl.BlockSpec((1, 1, c), lambda cc, i: (0, 0, 0))],
            out_specs=pl.BlockSpec((1, n, 1), lambda cc, i: (cc, 0, 0))),
        compiler_params=pltpu.CompilerParams(
            dimension_semantics=("parallel", "arbitrary")),
    )(f0r, f1r, lin_w.reshape(1, 1, c).astype(jnp.float32))
    return jnp.sum(out, axis=0) / hw               # spatial_average -> (N, 1)


# ----------------------------------------------------------------------------
# LPIPS (VGG16 backbone; synthetic deterministic weights stand in for the pretrained net).
# TODO(synk): real LPIPS uses pretrained VGG16 + lin weights; synthetic weights preserve the
# structure/compute only.
# ----------------------------------------------------------------------------
_VGG_SLICES = [
    [(3, 64), (64, 64)],                       # -> relu1_2
    [(64, 128), (128, 128)],                   # -> relu2_2
    [(128, 256), (256, 256), (256, 256)],      # -> relu3_3
    [(256, 512), (512, 512), (512, 512)],      # -> relu4_3
    [(512, 512), (512, 512), (512, 512)],      # -> relu5_3
]
_LPIPS_CHNS = [64, 128, 256, 512, 512]

_LPIPS_SHIFT = jnp.array([-0.030, -0.088, -0.188], jnp.float32).reshape(1, 1, 1, 3)
_LPIPS_SCALE = jnp.array([0.458, 0.448, 0.450], jnp.float32).reshape(1, 1, 1, 3)


def init_lpips_params(key):
    slices = []
    for convs in _VGG_SLICES:
        layer_params = []
        for cin, cout in convs:
            key, kw_ = jax.random.split(key)
            w = jax.random.normal(kw_, (cout, cin, 3, 3), jnp.float32) * jnp.sqrt(2.0 / (cin * 9))
            b = jnp.zeros((cout,), jnp.float32)
            layer_params.append(pack_conv(w, b, stride=1, pad=1))
        slices.append(layer_params)
    lins = []
    for ch in _LPIPS_CHNS:
        key, kl_ = jax.random.split(key)
        lins.append(jnp.abs(jax.random.normal(kl_, (ch,), jnp.float32)) * 0.05)
    return {"slices": slices, "lins": lins}


def lpips_forward(lpips_params, in0_nhwc, in1_nhwc):
    n = in0_nhwc.shape[0]
    # Both images share the VGG backbone -> run them as one 2N batch (one matmul per layer).
    h = jnp.concatenate([(in0_nhwc - _LPIPS_SHIFT) / _LPIPS_SCALE,
                         (in1_nhwc - _LPIPS_SHIFT) / _LPIPS_SCALE], axis=0).astype(jnp.bfloat16)
    total = None
    for si, (convs, lin_w) in enumerate(zip(lpips_params["slices"], lpips_params["lins"])):
        if si > 0:
            h = max_pool2_nhwc(h)
        for conv in convs:
            h = conv2d_mm(h, conv, act="relu")     # bias + ReLU fused in the matmul epilogue
        res = lpips_layer_dist(h[:n], h[n:], lin_w)   # (N, 1)
        total = res if total is None else total + res
    return total   # (N, 1) == p_loss of shape (N,1,1,1), squeezed


# ----------------------------------------------------------------------------
# NLayerDiscriminator (PatchGAN); weights_init: conv N(0, .02), BN gamma N(1, .02).
# ----------------------------------------------------------------------------
def init_disc_params(key, input_nc=3, ndf=64, n_layers=3):
    cfgs = [dict(cin=input_nc, cout=ndf, stride=2, bias=True, bn=False)]
    nf_mult = 1
    for nl in range(1, n_layers):
        nf_prev, nf_mult = nf_mult, min(2 ** nl, 8)
        cfgs.append(dict(cin=ndf * nf_prev, cout=ndf * nf_mult, stride=2, bias=False, bn=True))
    nf_prev, nf_mult = nf_mult, min(2 ** n_layers, 8)
    cfgs.append(dict(cin=ndf * nf_prev, cout=ndf * nf_mult, stride=1, bias=False, bn=True))
    cfgs.append(dict(cin=ndf * nf_mult, cout=1, stride=1, bias=True, bn=False))

    layers = []
    for cfg in cfgs:
        key, kw_, kg_ = jax.random.split(key, 3)
        w = jax.random.normal(kw_, (cfg["cout"], cfg["cin"], 4, 4), jnp.float32) * 0.02
        b = jnp.zeros((cfg["cout"],), jnp.float32) if cfg["bias"] else None
        layers.append(dict(
            conv=pack_conv(w, b, stride=cfg["stride"], pad=1),
            gamma=(1.0 + 0.02 * jax.random.normal(kg_, (cfg["cout"],), jnp.float32))
            if cfg["bn"] else None,
            beta=jnp.zeros((cfg["cout"],), jnp.float32) if cfg["bn"] else None,
        ))
    return layers


def discriminator_forward(disc_params, x_nhwc):
    h = x_nhwc
    n_layers = len(disc_params)
    for i, layer in enumerate(disc_params):
        is_last = i == n_layers - 1
        has_bn = layer["gamma"] is not None
        act = "none" if (has_bn or is_last) else "leaky"   # fuse LeakyReLU when no BN follows
        h = conv2d_mm(h, layer["conv"], act=act,
                      out_dtype=jnp.float32 if is_last else jnp.bfloat16)
        if has_bn:
            h = batch_norm_leaky(h, layer["gamma"], layer["beta"])   # fused BN + LeakyReLU
    return h   # logits (N, h', w', 1) f32


# ----------------------------------------------------------------------------
# LPIPSWithDiscriminator forward.
# ----------------------------------------------------------------------------
def adopt_weight(weight, global_step, threshold=0, value=0.0):
    # jnp.where so a traced global_step also works under jit
    return jnp.where(jnp.asarray(global_step) < threshold, value, weight)


def init_params(key, *, logvar_init=0.0, disc_in_channels=3, disc_num_layers=3):
    k_lpips, k_disc = jax.random.split(key)
    return {
        "logvar": jnp.array(logvar_init, jnp.float32),
        "lpips": init_lpips_params(k_lpips),
        "disc": init_disc_params(k_disc, input_nc=disc_in_channels, n_layers=disc_num_layers),
    }


def lpips_with_discriminator_forward(
        params, inputs, reconstructions, posterior_mean, posterior_logvar,
        optimizer_idx, global_step, *, disc_start,
        kl_weight=1.0, pixelloss_weight=1.0, disc_factor=1.0, disc_weight=1.0,
        perceptual_weight=1.0, split="train"):
    n, c, h, w = inputs.shape
    d = c * h * w
    x = inputs.astype(jnp.float32)
    xr = reconstructions.astype(jnp.float32)
    x_nhwc = x.transpose(0, 2, 3, 1)
    xr_nhwc = xr.transpose(0, 2, 3, 1)

    # sum |x - xrec| over all elements (tiled Pallas reduction)
    abs_sum = tiled_sum(lambda a, b: jnp.abs(a - b), x, xr)

    if perceptual_weight > 0:
        p_loss = lpips_forward(params["lpips"], x_nhwc, xr_nhwc)   # (N, 1)
        p_sum = jnp.sum(p_loss)
    else:
        p_sum = jnp.array(0.0, jnp.float32)

    # rec_loss = |x-xr| + pw * p_loss (p_loss broadcast over C*H*W per sample)
    # nll      = rec_loss * exp(-logvar) + logvar; combine the broadcast terms analytically.
    logvar = params["logvar"]
    rec_sum = abs_sum + perceptual_weight * d * p_sum
    nll_sum = jnp.exp(-logvar) * rec_sum + logvar * (n * d)
    nll_loss = nll_sum / n
    weighted_nll_loss = nll_loss                 # weights is None in this path
    rec_loss_mean = rec_sum / (n * d)

    # KL of the diagonal Gaussian posterior (sum over latent dims, then / batch)
    def _kl_elem(m, lv):
        lvc = jnp.clip(lv, -30.0, 20.0)
        return 0.5 * (m * m + jnp.exp(lvc) - 1.0 - lvc)

    kl_loss = tiled_sum(_kl_elem, posterior_mean, posterior_logvar) / n
    ldmk_kl_loss = jnp.array(0.0, jnp.float32)   # ldmk_posterior is None

    disc_factor_eff = adopt_weight(disc_factor, global_step, threshold=disc_start)

    if optimizer_idx == 0:
        logits_fake = discriminator_forward(params["disc"], xr_nhwc)
        g_loss = -(tiled_sum(lambda v: v, logits_fake) / logits_fake.size)
        # TODO(synk): calculate_adaptive_weight needs autograd of nll/g_loss w.r.t. the
        # generator's last layer (outside this module); we take the eval-mode fallback
        # (RuntimeError branch): d_weight = 0.0.
        d_weight = jnp.array(0.0, jnp.float32)
        loss = (weighted_nll_loss + kl_weight * kl_loss + kl_weight * ldmk_kl_loss
                + d_weight * disc_factor_eff * g_loss)
        log = {
            f"{split}/total_loss": loss,
            f"{split}/logvar": params["logvar"],
            f"{split}/kl_loss": kl_loss,
            f"{split}/ldmk_kl_loss": ldmk_kl_loss,
            f"{split}/nll_loss": nll_loss,
            f"{split}/rec_loss": rec_loss_mean,
            f"{split}/d_weight": d_weight,
            f"{split}/disc_factor": disc_factor_eff,
            f"{split}/g_loss": g_loss,
        }
        return loss, log

    if optimizer_idx == 1:
        logits_real = discriminator_forward(params["disc"], x_nhwc)
        logits_fake = discriminator_forward(params["disc"], xr_nhwc)
        cnt = logits_real.size
        valid = jnp.ones(logits_real.shape, jnp.float32)   # masks the reduction padding
        loss_real = tiled_sum(lambda r, m: m * jnp.maximum(1.0 - r, 0.0),
                              logits_real, valid) / cnt
        loss_fake = tiled_sum(lambda f, m: m * jnp.maximum(1.0 + f, 0.0),
                              logits_fake, valid) / cnt
        d_loss = disc_factor_eff * 0.5 * (loss_real + loss_fake)   # hinge_d_loss
        log = {
            f"{split}/disc_loss": d_loss,
            f"{split}/logits_real": tiled_sum(lambda v: v, logits_real) / cnt,
            f"{split}/logits_fake": tiled_sum(lambda v: v, logits_fake) / cnt,
        }
        return d_loss, log

    raise ValueError("optimizer_idx must be 0 or 1")


# ----------------------------------------------------------------------------
if __name__ == "__main__":
    key = jax.random.PRNGKey(0)
    k_in, k_rec, k_pm, k_plv, k_params = jax.random.split(key, 5)

    # spatial >= 32 so the 5-layer PatchGAN discriminator produces valid logits
    N, C, H, W = 2, 3, 32, 32
    inputs = jax.random.uniform(k_in, (N, C, H, W), jnp.float32, -1.0, 1.0)
    reconstructions = jax.random.uniform(k_rec, (N, C, H, W), jnp.float32, -1.0, 1.0)
    zC, zH, zW = 4, 4, 4
    posterior_mean = 0.1 * jax.random.normal(k_pm, (N, zC, zH, zW), jnp.float32)
    posterior_logvar = 0.1 * jax.random.normal(k_plv, (N, zC, zH, zW), jnp.float32)

    params = init_params(k_params, logvar_init=0.0, disc_in_channels=3, disc_num_layers=3)

    # Generator / autoencoder update (optimizer_idx=0), before disc_start
    loss_g, log_g = lpips_with_discriminator_forward(
        params, inputs, reconstructions, posterior_mean, posterior_logvar,
        optimizer_idx=0, global_step=0, disc_start=50)

    # Discriminator update (optimizer_idx=1), after disc_start
    loss_d, log_d = lpips_with_discriminator_forward(
        params, inputs, reconstructions, posterior_mean, posterior_logvar,
        optimizer_idx=1, global_step=100, disc_start=50)

    jax.block_until_ready((loss_g, loss_d, log_g, log_d))
    print("KERNEL_OK")
</pallas_src>

<mosaic_0001>
module attributes {stable_mosaic.version = 11 : i64} {
  func.func @kernel(%arg0: i32, %arg1: i32, %arg2: memref<16x512xf32, #tpu.memory_space<vmem>>, %arg3: memref<16x512xf32, #tpu.memory_space<vmem>>, %arg4: memref<1x1x1xf32, #tpu.memory_space<vmem>>) attributes {dimension_semantics = [#tpu.dimension_semantics<parallel>, #tpu.dimension_semantics<arbitrary>], iteration_bounds = array<i64: 1, 1>, scalar_prefetch = 0 : i64, scratch_operands = 0 : i64, tpu.core_type = #tpu.core_type<tc>, window_params = [{transform_indices = @transform_0, window_bounds = array<i64: 16, 512>}, {transform_indices = @transform_1, window_bounds = array<i64: 16, 512>}, {transform_indices = @transform_2, window_bounds = array<i64: 1, 1, 1>}]} {
    %c0_i32 = arith.constant 0 : i32
    %0 = arith.cmpi eq, %arg1, %c0_i32 : i32
    %1 = arith.extui %0 : i1 to i32
    %c0_i32_0 = arith.constant 0 : i32
    %2 = arith.cmpi ne, %1, %c0_i32_0 : i32
    scf.if %2 {
      %cst_11 = arith.constant 0.000000e+00 : f32
      %15 = vector.broadcast %cst_11 : f32 to vector<1x1x1xf32>
      %c0_12 = arith.constant 0 : index
      %c0_13 = arith.constant 0 : index
      %c0_14 = arith.constant 0 : index
      %16 = vector.load %arg4[%c0_12, %c0_13, %c0_14] : memref<1x1x1xf32, #tpu.memory_space<vmem>>, vector<1x1x1xf32>
      tpu.vector_store %arg4[%c0_12, %c0_13, %c0_14], %15 {strides = array<i32>} : memref<1x1x1xf32, #tpu.memory_space<vmem>>, vector<1x1x1xf32>,
    } else {
    }
    %c0 = arith.constant 0 : index
    %c0_1 = arith.constant 0 : index
    %3 = vector.load %arg2[%c0, %c0_1] : memref<16x512xf32, #tpu.memory_space<vmem>>, vector<16x512xf32>
    %c0_2 = arith.constant 0 : index
    %c0_3 = arith.constant 0 : index
    %4 = vector.load %arg3[%c0_2, %c0_3] : memref<16x512xf32, #tpu.memory_space<vmem>>, vector<16x512xf32>
    %5 = arith.subf %3, %4 : vector<16x512xf32>
    %6 = math.absf %5 : vector<16x512xf32>
    %cst = arith.constant dense<0.000000e+00> : vector<16xf32>
    %7 = vector.multi_reduction <add>, %6, %cst [1] : vector<16x512xf32> to vector<16xf32>
    %8 = vector.shape_cast %7 : vector<16xf32> to vector<16x1xf32>
    %cst_4 = arith.constant dense<0.000000e+00> : vector<1xf32>
    %9 = vector.multi_reduction <add>, %8, %cst_4 [0] : vector<16x1xf32> to vector<1xf32>
    %10 = vector.shape_cast %9 : vector<1xf32> to vector<1x1xf32>
    %c0_5 = arith.constant 0 : index
    %c0_6 = arith.constant 0 : index
    %c0_7 = arith.constant 0 : index
    %11 = vector.load %arg4[%c0_5, %c0_6, %c0_7] : memref<1x1x1xf32, #tpu.memory_space<vmem>>, vector<1x1x1xf32>
    %12 = vector.shape_cast %10 : vector<1x1xf32> to vector<1x1x1xf32>
    %13 = arith.addf %11, %12 : vector<1x1x1xf32>
    %c0_8 = arith.constant 0 : index
    %c0_9 = arith.constant 0 : index
    %c0_10 = arith.constant 0 : index
    %14 = vector.load %arg4[%c0_8, %c0_9, %c0_10] : memref<1x1x1xf32, #tpu.memory_space<vmem>>, vector<1x1x1xf32>
    tpu.vector_store %arg4[%c0_8, %c0_9, %c0_10], %13 {strides = array<i32>} : memref<1x1x1xf32, #tpu.memory_space<vmem>>, vector<1x1x1xf32>,
    return
  }
  func.func @transform_0(%arg0: i32, %arg1: i32) -> (i32, i32) {
    %c1_i32 = arith.constant 1 : i32
    %0 = arith.muli %arg0, %c1_i32 : i32
    %1 = arith.addi %0, %arg1 : i32
    %c0_i32 = arith.constant 0 : i32
    %c0_i32_0 = arith.constant 0 : i32
    return %1, %c0_i32 : i32, i32
  }
  func.func @transform_1(%arg0: i32, %arg1: i32) -> (i32, i32) {
    %c1_i32 = arith.constant 1 : i32
    %0 = arith.muli %arg0, %c1_i32 : i32
    %1 = arith.addi %0, %arg1 : i32
    %c0_i32 = arith.constant 0 : i32
    %c0_i32_0 = arith.constant 0 : i32
    return %1, %c0_i32 : i32, i32
  }
  func.func @transform_2(%arg0: i32, %arg1: i32) -> (i32, i32, i32) {
    %c0_i32 = arith.constant 0 : i32
    %c0_i32_0 = arith.constant 0 : i32
    %c0_i32_1 = arith.constant 0 : i32
    return %arg0, %c0_i32, %c0_i32_0 : i32, i32, i32
  }
}

</mosaic_0001>

<llo_original>
// kernel: tpu_custom_call.1
$region0: #{tpu_custom_call.1}
  #allocation0 [shape = 'u32[]', space=smem, size = 0x4, offset = 0x4, fixed_abs, tag = 'smem constant byte address 0x4 - core index']
  #allocation1 [shape = 'u32[144,128]{1,0:T(1,128)}', space=vmem, size = 0x12000, scoped, tag = 'internal scratch']
  %s0 = inlined_call_operand.hbm [shape: f32[16,512], index: 0, kind: input, shape index: {}]
  %s1 = inlined_call_operand.hbm [shape: f32[16,512], index: 1, kind: input, shape index: {}]
  %s2 = inlined_call_operand.hbm [shape: f32[1,1,1], index: 2, kind: output, shape index: {}]
  %s3 = sld [smem:[#allocation0]]
  $region30: #{tpu_custom_call.1} parent=0
    _
  %s5 = ssub.s32 1, %s3
  %s6 = scalar_select 0, %s5, %s3
  $region1: #{tpu_custom_call.1} parent=0
    #allocation2 [shape = 'u8[32768]{0}', space=vmem, size = 0x8000, scoped, tag = 'input window, operand 0, single buffered']
    #allocation3 [shape = 's32[1]{0}', space=sflag, size = 0x4, scoped, tag = 'scoped memory for tpu_custom_call.1']
    #allocation4 [shape = 's32[1]{0}', space=sflag, size = 0x4, scoped, tag = 'scoped memory for tpu_custom_call.1']
    #allocation5 [shape = 'u8[32768]{0}', space=vmem, size = 0x8000, scoped, tag = 'input window, operand 1, single buffered']
    #allocation6 [shape = 's32[1]{0}', space=sflag, size = 0x4, scoped, tag = 'scoped memory for tpu_custom_call.1']
    #allocation7 [shape = 'u8[512]{0}', space=vmem, size = 0x400, scoped, tag = 'output window, operand 0, single buffered']
    %7 = vsyncpa [#allocation3], 0
    %8 = vsyncpa [#allocation6], 0
    %9 = vsyncpa [#allocation4], 0
    // Predicated region
    $region2: #{tpu_custom_call.1} parent=1 // pred_check
      _
    $region3: #{tpu_custom_call.1} parent=1 // pred_check_branch
      %11 = sbr.rel (0) target = $region5
    $region4: #{tpu_custom_call.1} parent=1 // pred_region
      %s12 = sadd.s32 0, 0
      %s13 = smul.u32 2, %s12
      %s15 = ssub.s32 1024, 1024
      %16 = vsyncadd [#allocation3], %s15
      %s17 = smul.addr %s13, 4
      %s18 = smul.addr %s17, 128
      %s19 = scalar_lea.hbm %s0, %s18
      %s20 = sshll.u32 [#allocation2], 4
      %s21 = int_to_ptr.vmem [resolvable:$true] %s20
      %26 = dma.hbm_to_vmem [thread:$0]  %s19, 1024, %s21, [#allocation3], 512, 512, 32
    $region5: #{tpu_custom_call.1} parent=1 // pred_fallthru
      _
    // Predicated region
    $region6: #{tpu_custom_call.1} parent=1 // pred_check
      _
    $region7: #{tpu_custom_call.1} parent=1 // pred_check_branch
      %28 = sbr.rel (0) target = $region9
    $region8: #{tpu_custom_call.1} parent=1 // pred_region
      %s29 = sadd.s32 0, 0
      %s30 = smul.u32 2, %s29
      %s32 = ssub.s32 1024, 1024
      %33 = vsyncadd [#allocation6], %s32
      %s34 = smul.addr %s30, 4
      %s35 = smul.addr %s34, 128
      %s36 = scalar_lea.hbm %s1, %s35
      %s37 = sshll.u32 [#allocation5], 4
      %s38 = int_to_ptr.vmem [resolvable:$true] %s37
      %43 = dma.hbm_to_vmem [thread:$0]  %s36, 1024, %s38, [#allocation6], 512, 512, 32
    $region9: #{tpu_custom_call.1} parent=1 // pred_fallthru
      _
    // Predicated region
    $region10: #{tpu_custom_call.1} parent=1 // pred_check
      _
    $region11: #{tpu_custom_call.1} parent=1 // pred_check_branch
      %45 = sbr.rel (0) target = $region13
    $region12: #{tpu_custom_call.1} parent=1 // pred_region
      %46 = dma.done [#allocation3], 1024
    $region13: #{tpu_custom_call.1} parent=1 // pred_fallthru
      _
    // Predicated region
    $region14: #{tpu_custom_call.1} parent=1 // pred_check
      _
    $region15: #{tpu_custom_call.1} parent=1 // pred_check_branch
      %48 = sbr.rel (0) target = $region17
    $region16: #{tpu_custom_call.1} parent=1 // pred_region
      %49 = dma.done [#allocation6], 1024
    $region17: #{tpu_custom_call.1} parent=1 // pred_fallthru
      _
    %s50 = sadd.s32 0, 0
    %s51 = smul.u32 2, %s50
    %s52 = sadd.s32 0, 0
    %s53 = smul.u32 2, %s52
    %p54 = scmp.eq.s32.totalorder 0, 0
    // Predicated region
    $region18: #{tpu_custom_call.1} parent=1 // pred_check
      %p55 = pneg %p54
    $region19: #{tpu_custom_call.1} parent=1 // pred_check_branch
      %57 = sbr.rel (%p55) target = $region21
    $region20: #{tpu_custom_call.1} parent=1 // pred_region
      %vm58 = vcmask 0
      %59 = vst.msk [vmem:[#allocation7] sm:$0x1] %vm58, 0.0
    $region21: #{tpu_custom_call.1} parent=1 // pred_fallthru
      _
    %v60 = vld [vmem:[#allocation2] sm:$0xff]
    %v61 = vld [vmem:[#allocation2 + $0x8] sm:$0xff]
    %v62 = vld [vmem:[#allocation2 + $0x10] sm:$0xff]
    %v63 = vld [vmem:[#allocation2 + $0x18] sm:$0xff]
    %v64 = vld [vmem:[#allocation2 + $0x20] sm:$0xff]
    %v65 = vld [vmem:[#allocation2 + $0x28] sm:$0xff]
    %v66 = vld [vmem:[#allocation2 + $0x30] sm:$0xff]
    %v67 = vld [vmem:[#allocation2 + $0x38] sm:$0xff]
    %v68 = vld [vmem:[#allocation5] sm:$0xff]
    %v69 = vld [vmem:[#allocation5 + $0x8] sm:$0xff]
    %v70 = vld [vmem:[#allocation5 + $0x10] sm:$0xff]
    %v71 = vld [vmem:[#allocation5 + $0x18] sm:$0xff]
    %v72 = vld [vmem:[#allocation5 + $0x20] sm:$0xff]
    %v73 = vld [vmem:[#allocation5 + $0x28] sm:$0xff]
    %v74 = vld [vmem:[#allocation5 + $0x30] sm:$0xff]
    %v75 = vld [vmem:[#allocation5 + $0x38] sm:$0xff]
    %v76 = vsub.f32 %v60, %v68
    %v77 = vsub.f32 %v61, %v69
    %v78 = vsub.f32 %v62, %v70
    %v79 = vsub.f32 %v63, %v71
    %v80 = vsub.f32 %v64, %v72
    %v81 = vsub.f32 %v65, %v73
    %v82 = vsub.f32 %v66, %v74
    %v83 = vsub.f32 %v67, %v75
    %v84 = vand.u32 2147483647, %v76
    %v85 = vand.u32 2147483647, %v77
    %v86 = vand.u32 2147483647, %v78
    %v87 = vand.u32 2147483647, %v79
    %v88 = vand.u32 2147483647, %v80
    %v89 = vand.u32 2147483647, %v81
    %v90 = vand.u32 2147483647, %v82
    %v91 = vand.u32 2147483647, %v83
    %v92 = vadd.f32 %v84, %v85
    %v93 = vadd.f32 %v92, %v86
    %v94 = vadd.f32 %v93, %v87
    %95 = vadd.xlane.f32.xlu0 %v94
    %v96 = vpop.xlane.xlu0 %95
    %v97 = vadd.f32 %v88, %v89
    %v98 = vadd.f32 %v97, %v90
    %v99 = vadd.f32 %v98, %v91
    %100 = vadd.xlane.f32.xlu0 %v99
    %v101 = vpop.xlane.xlu0 %100
    %v102 = vadd.f32 %v96, %v101
    %v103 = vrot.slane %v102, 4
    %v104 = vadd.f32 %v102, %v103
    %v105 = vrot.slane %v104, 2
    %v106 = vadd.f32 %v104, %v105
    %v107 = vrot.slane %v106, 1
    %v108 = vadd.f32 %v106, %v107
    %v109 = vld [vmem:[#allocation7] sm:$0x1]
    %v110 = vadd.f32 %v109, %v108
    %vm111 = vcmask 0
    %112 = vst.msk [vmem:[#allocation7] sm:$0x1] %vm111, %v110
    // Predicated region
    $region22: #{tpu_custom_call.1} parent=1 // pred_check
      _
    $region23: #{tpu_custom_call.1} parent=1 // pred_check_branch
      %114 = sbr.rel (0) target = $region25
    $region24: #{tpu_custom_call.1} parent=1 // pred_region
      %s116 = ssub.s32 16, 16
      %117 = vsyncadd [#allocation4], %s116
      %s119 = sshll.u32 [#allocation7], 4
      %s120 = int_to_ptr.vmem [resolvable:$true] %s119
      %122 = dma.vmem_to_hbm [thread:$0]  %s120, 16, %s2, [#allocation4]
    $region25: #{tpu_custom_call.1} parent=1 // pred_fallthru
      _
    // Predicated region
    $region26: #{tpu_custom_call.1} parent=1 // pred_check
      _
    $region27: #{tpu_custom_call.1} parent=1 // pred_check_branch
      %124 = sbr.rel (0) target = $region29
    $region28: #{tpu_custom_call.1} parent=1 // pred_region
      %125 = dma.done [#allocation4], 16
    $region29: #{tpu_custom_call.1} parent=1 // pred_fallthru
      _
    %126 = vsyncpa [#allocation3], 1
    %127 = vsyncpa [#allocation6], 1
    %128 = vsyncpa [#allocation4], 1

</llo_original>
